<compile_context>
chip_gen: v6e
topology: v6e:2x2x1
jax: 0.10.0
libtpu: 0.0.40
codegen_flags: <defaults>
</compile_context>

<pallas_src>
import functools

import jax
import jax.numpy as jnp
from jax import lax
from jax.experimental import pallas as pl
from jax.experimental.pallas import tpu as pltpu

_SUB = 8                                  # sublane count (f32 vreg rows)
_TARGET_BLOCK_BYTES = 4 * 1024 * 1024     # per-input block per grid step
_VMEM_LIMIT_BYTES = 40 * 1024 * 1024      # safe on v5e/v6e (128 MiB) and v7x (64 MiB)


def _cdiv(a, b):
    return -(-a // b)


def _round_down(a, m):
    return a // m * m


def _partial_sums_kernel(o_ref, t_ref, sq_ref, ab_ref, *, rows, tile_r, chunk, need_mask):
    c = pl.program_id(0)          # core-group axis ("parallel")
    i = pl.program_id(1)          # block axis within the group ("arbitrary")
    bpc = pl.num_programs(1)

    @pl.when(i == 0)
    def _():
        sq_ref[...] = jnp.zeros_like(sq_ref)
        ab_ref[...] = jnp.zeros_like(ab_ref)

    # Logical (un-clamped) block index -> base row for masking.  The DMA block
    # index is clamped inside the index_map, so any ragged / duplicate rows read
    # here are zeroed out instead of being double counted.
    row_base = (c * bpc + i) * tile_r
    k = o_ref.shape[-1]

    def body(j, carry):
        r0 = pl.multiple_of(j * chunk, chunk)
        o = o_ref[pl.ds(r0, chunk), :].astype(jnp.float32)
        t = t_ref[pl.ds(r0, chunk), :].astype(jnp.float32)
        d = o - t
        if need_mask:
            rid = row_base + r0 + lax.broadcasted_iota(jnp.int32, (chunk, 1), 0)
            d = jnp.where(rid < rows, d, 0.0)
        # Fold the chunk onto the (8, K) accumulators: the reduction over the
        # leading axis is plain VPU vreg adds (no cross-lane XLU work).
        d3 = d.reshape(chunk // _SUB, _SUB, k)
        sq_ref[...] += jnp.sum(d3 * d3, axis=0)
        ab_ref[...] += jnp.sum(jnp.abs(d3), axis=0)
        return carry

    n_chunks = tile_r // chunk
    lax.fori_loop(0, n_chunks, body, 0, unroll=min(n_chunks, 8))


def _pallas_partial_sums(o2, t2):
    """Returns (sum((o-t)^2), sum(|o-t|)) over a (rows, K) slab, rows >= 8."""
    rows, K = o2.shape
    itemsize = max(jnp.dtype(o2.dtype).itemsize, jnp.dtype(t2.dtype).itemsize)

    tile_target = max(_SUB, _round_down(_TARGET_BLOCK_BYTES // (K * itemsize), _SUB))
    tile_r = min(tile_target, _round_down(rows, _SUB))       # multiple of 8, <= rows
    chunk = next(c for c in (256, 128, 64, 32, 16, 8) if tile_r % c == 0)

    blocks = _cdiv(rows, tile_r)
    groups = 2 if blocks >= 2 else 1        # v7x: one group per TensorCore
    bpc = _cdiv(blocks, groups)
    need_mask = (rows % tile_r != 0) or (groups * bpc != blocks)

    def in_map(c, i):
        # Clamp so extra / ragged grid steps re-read the last valid block; the
        # kernel's row mask zeroes their contribution.
        return (jnp.minimum(c * bpc + i, blocks - 1), 0)

    kernel = functools.partial(
        _partial_sums_kernel, rows=rows, tile_r=tile_r, chunk=chunk, need_mask=need_mask
    )

    out_sq, out_ab = pl.pallas_call(
        kernel,
        out_shape=(
            jax.ShapeDtypeStruct((groups, _SUB, K), jnp.float32),
            jax.ShapeDtypeStruct((groups, _SUB, K), jnp.float32),
        ),
        grid_spec=pltpu.PrefetchScalarGridSpec(
            num_scalar_prefetch=0,
            grid=(groups, bpc),
            in_specs=[
                pl.BlockSpec((tile_r, K), in_map),
                pl.BlockSpec((tile_r, K), in_map),
            ],
            out_specs=[
                pl.BlockSpec((None, _SUB, K), lambda c, i: (c, 0, 0)),
                pl.BlockSpec((None, _SUB, K), lambda c, i: (c, 0, 0)),
            ],
        ),
        compiler_params=pltpu.CompilerParams(
            dimension_semantics=("parallel", "arbitrary"),
            vmem_limit_bytes=_VMEM_LIMIT_BYTES,
        ),
    )(o2, t2)
    # Tiny (groups * 8 * K) partials -> final cross-lane reduce in plain JAX.
    return jnp.sum(out_sq), jnp.sum(out_ab)


def _pick_layout(n):
    """Largest lane-dense width K that gives a zero-copy (rows>=8, K) view."""
    for K in (512, 256, 128):
        if n % K == 0 and n // K >= _SUB:
            return K, True
    return 128, False


def combined_loss(output, target, alpha=0.5):
    """alpha * mean((o-t)^2) + (1-alpha) * mean(|o-t|), like the PyTorch module."""
    assert output.shape == target.shape
    n = int(output.size)
    alpha = float(alpha)

    of = output.reshape(-1)
    tf = target.reshape(-1)

    K, zero_copy = _pick_layout(n)
    rows = n // K
    n_main = rows * K if rows >= _SUB else 0

    if n_main > 0:
        if zero_copy:
            o_main, t_main = of, tf                      # free reshape view, no copy
        else:
            # TODO(synk): when n is not a multiple of 128, slicing the main slab
            # costs one extra HBM copy of it; a manual-DMA (memory_space=pl.ANY)
            # variant could avoid this but is not worth the complexity for a loss.
            o_main, t_main = of[:n_main], tf[:n_main]
        sq, ab = _pallas_partial_sums(
            o_main.reshape(rows, K), t_main.reshape(rows, K)
        )
    else:
        sq = jnp.float32(0.0)
        ab = jnp.float32(0.0)

    if n_main < n:  # < K*8 leftover elements -> tiny plain-JAX reduction
        dt = of[n_main:].astype(jnp.float32) - tf[n_main:].astype(jnp.float32)
        sq = sq + jnp.sum(dt * dt)
        ab = ab + jnp.sum(jnp.abs(dt))

    # alpha / (1-alpha) / 1/n applied outside the kernel -> no recompile per alpha.
    return (alpha * sq + (1.0 - alpha) * ab) / n


def _reference(output, target, alpha):
    d = output.astype(jnp.float32) - target.astype(jnp.float32)
    return alpha * jnp.mean(d * d) + (1.0 - alpha) * jnp.mean(jnp.abs(d))


if __name__ == "__main__":
    key = jax.random.PRNGKey(0)
    alpha = 0.5

    # Case 1: small NCHW prediction/target pair (zero-copy path, single block).
    k1, k2, k3, k4 = jax.random.split(key, 4)
    out1 = jax.random.normal(k1, (2, 4, 16, 16), dtype=jnp.float32)
    tgt1 = jax.random.normal(k2, (2, 4, 16, 16), dtype=jnp.float32)
    loss1 = jax.block_until_ready(combined_loss(out1, tgt1, alpha=alpha))
    ref1 = _reference(out1, tgt1, alpha)
    assert jnp.allclose(loss1, ref1, rtol=1e-5, atol=1e-6), (loss1, ref1)

    # Case 2: shape that exercises the ragged-block mask and the 2-group split.
    out2 = jax.random.normal(k3, (2, 3, 16, 16), dtype=jnp.float32)
    tgt2 = jax.random.normal(k4, (2, 3, 16, 16), dtype=jnp.float32)
    loss2 = jax.block_until_ready(combined_loss(out2, tgt2, alpha=alpha))
    ref2 = _reference(out2, tgt2, alpha)
    assert jnp.allclose(loss2, ref2, rtol=1e-5, atol=1e-6), (loss2, ref2)

    print("KERNEL_OK")
</pallas_src>

<mosaic_0001>
module attributes {stable_mosaic.version = 11 : i64} {
  func.func @_partial_sums_kernel(%arg0: i32, %arg1: i32, %arg2: memref<8x256xf32, #tpu.memory_space<vmem>>, %arg3: memref<8x256xf32, #tpu.memory_space<vmem>>, %arg4: memref<1x8x256xf32, #tpu.memory_space<vmem>>, %arg5: memref<1x8x256xf32, #tpu.memory_space<vmem>>) attributes {dimension_semantics = [#tpu.dimension_semantics<parallel>, #tpu.dimension_semantics<arbitrary>], iteration_bounds = array<i64: 1, 1>, scalar_prefetch = 0 : i64, scratch_operands = 0 : i64, tpu.core_type = #tpu.core_type<tc>, window_params = [{transform_indices = @transform_0, window_bounds = array<i64: 8, 256>}, {transform_indices = @transform_1, window_bounds = array<i64: 8, 256>}, {transform_indices = @transform_2, window_bounds = array<i64: 1, 8, 256>}, {transform_indices = @transform_3, window_bounds = array<i64: 1, 8, 256>}]} {
    %c0_i32 = arith.constant 0 : i32
    %0 = arith.cmpi eq, %arg1, %c0_i32 : i32
    %1 = arith.extui %0 : i1 to i32
    %c0_i32_0 = arith.constant 0 : i32
    %2 = arith.cmpi ne, %1, %c0_i32_0 : i32
    scf.if %2 {
      %cst_16 = arith.constant 0.000000e+00 : f32
      %27 = vector.broadcast %cst_16 : f32 to vector<8x256xf32>
      %c0_17 = arith.constant 0 : index
      %c0_18 = arith.constant 0 : index
      %c0_19 = arith.constant 0 : index
      %28 = vector.load %arg4[%c0_17, %c0_18, %c0_19] : memref<1x8x256xf32, #tpu.memory_space<vmem>>, vector<1x8x256xf32>
      %29 = vector.shape_cast %28 : vector<1x8x256xf32> to vector<8x256xf32>
      %30 = vector.shape_cast %27 : vector<8x256xf32> to vector<1x8x256xf32>
      tpu.vector_store %arg4[%c0_17, %c0_18, %c0_19], %30 {strides = array<i32>} : memref<1x8x256xf32, #tpu.memory_space<vmem>>, vector<1x8x256xf32>,
      %cst_20 = arith.constant 0.000000e+00 : f32
      %31 = vector.broadcast %cst_20 : f32 to vector<8x256xf32>
      %c0_21 = arith.constant 0 : index
      %c0_22 = arith.constant 0 : index
      %c0_23 = arith.constant 0 : index
      %32 = vector.load %arg5[%c0_21, %c0_22, %c0_23] : memref<1x8x256xf32, #tpu.memory_space<vmem>>, vector<1x8x256xf32>
      %33 = vector.shape_cast %32 : vector<1x8x256xf32> to vector<8x256xf32>
      %34 = vector.shape_cast %31 : vector<8x256xf32> to vector<1x8x256xf32>
      tpu.vector_store %arg5[%c0_21, %c0_22, %c0_23], %34 {strides = array<i32>} : memref<1x8x256xf32, #tpu.memory_space<vmem>>, vector<1x8x256xf32>,
    } else {
    }
    %c0_i32_1 = arith.constant 0 : i32
    %c8_i32 = arith.constant 8 : i32
    %3 = arith.muli %c0_i32_1, %c8_i32 : i32
    %4 = tpu.assume_multiple %3, 8 : i32
    %5 = arith.index_cast %4 : i32 to index
    %c0 = arith.constant 0 : index
    %6 = vector.load %arg2[%5, %c0] : memref<8x256xf32, #tpu.memory_space<vmem>>, vector<8x256xf32>
    %7 = arith.index_cast %4 : i32 to index
    %c0_2 = arith.constant 0 : index
    %8 = vector.load %arg3[%7, %c0_2] : memref<8x256xf32, #tpu.memory_space<vmem>>, vector<8x256xf32>
    %9 = arith.subf %6, %8 : vector<8x256xf32>
    %10 = vector.shape_cast %9 : vector<8x256xf32> to vector<1x8x256xf32>
    %c0_3 = arith.constant 0 : index
    %c0_4 = arith.constant 0 : index
    %c0_5 = arith.constant 0 : index
    %11 = vector.load %arg4[%c0_3, %c0_4, %c0_5] : memref<1x8x256xf32, #tpu.memory_space<vmem>>, vector<1x8x256xf32>
    %12 = vector.shape_cast %11 : vector<1x8x256xf32> to vector<8x256xf32>
    %13 = arith.mulf %10, %10 : vector<1x8x256xf32>
    %cst = arith.constant dense<0.000000e+00> : vector<8x256xf32>
    %14 = vector.multi_reduction <add>, %13, %cst [0] : vector<1x8x256xf32> to vector<8x256xf32>
    %15 = arith.addf %12, %14 : vector<8x256xf32>
    %c0_6 = arith.constant 0 : index
    %c0_7 = arith.constant 0 : index
    %c0_8 = arith.constant 0 : index
    %16 = vector.load %arg4[%c0_6, %c0_7, %c0_8] : memref<1x8x256xf32, #tpu.memory_space<vmem>>, vector<1x8x256xf32>
    %17 = vector.shape_cast %16 : vector<1x8x256xf32> to vector<8x256xf32>
    %18 = vector.shape_cast %15 : vector<8x256xf32> to vector<1x8x256xf32>
    tpu.vector_store %arg4[%c0_6, %c0_7, %c0_8], %18 {strides = array<i32>} : memref<1x8x256xf32, #tpu.memory_space<vmem>>, vector<1x8x256xf32>,
    %c0_9 = arith.constant 0 : index
    %c0_10 = arith.constant 0 : index
    %c0_11 = arith.constant 0 : index
    %19 = vector.load %arg5[%c0_9, %c0_10, %c0_11] : memref<1x8x256xf32, #tpu.memory_space<vmem>>, vector<1x8x256xf32>
    %20 = vector.shape_cast %19 : vector<1x8x256xf32> to vector<8x256xf32>
    %21 = math.absf %10 : vector<1x8x256xf32>
    %cst_12 = arith.constant dense<0.000000e+00> : vector<8x256xf32>
    %22 = vector.multi_reduction <add>, %21, %cst_12 [0] : vector<1x8x256xf32> to vector<8x256xf32>
    %23 = arith.addf %20, %22 : vector<8x256xf32>
    %c0_13 = arith.constant 0 : index
    %c0_14 = arith.constant 0 : index
    %c0_15 = arith.constant 0 : index
    %24 = vector.load %arg5[%c0_13, %c0_14, %c0_15] : memref<1x8x256xf32, #tpu.memory_space<vmem>>, vector<1x8x256xf32>
    %25 = vector.shape_cast %24 : vector<1x8x256xf32> to vector<8x256xf32>
    %26 = vector.shape_cast %23 : vector<8x256xf32> to vector<1x8x256xf32>
    tpu.vector_store %arg5[%c0_13, %c0_14, %c0_15], %26 {strides = array<i32>} : memref<1x8x256xf32, #tpu.memory_space<vmem>>, vector<1x8x256xf32>,
    %c1_i32 = arith.constant 1 : i32
    return
  }
  func.func @transform_0(%arg0: i32, %arg1: i32) -> (i32, i32) {
    %c1_i32 = arith.constant 1 : i32
    %0 = arith.muli %arg0, %c1_i32 : i32
    %1 = arith.addi %0, %arg1 : i32
    %c0_i32 = arith.constant 0 : i32
    %2 = arith.minsi %1, %c0_i32 : i32
    %c0_i32_0 = arith.constant 0 : i32
    %c0_i32_1 = arith.constant 0 : i32
    return %2, %c0_i32_0 : i32, i32
  }
  func.func @transform_1(%arg0: i32, %arg1: i32) -> (i32, i32) {
    %c1_i32 = arith.constant 1 : i32
    %0 = arith.muli %arg0, %c1_i32 : i32
    %1 = arith.addi %0, %arg1 : i32
    %c0_i32 = arith.constant 0 : i32
    %2 = arith.minsi %1, %c0_i32 : i32
    %c0_i32_0 = arith.constant 0 : i32
    %c0_i32_1 = arith.constant 0 : i32
    return %2, %c0_i32_0 : i32, i32
  }
  func.func @transform_2(%arg0: i32, %arg1: i32) -> (i32, i32, i32) {
    %c0_i32 = arith.constant 0 : i32
    %c0_i32_0 = arith.constant 0 : i32
    %c0_i32_1 = arith.constant 0 : i32
    return %arg0, %c0_i32, %c0_i32_0 : i32, i32, i32
  }
  func.func @transform_3(%arg0: i32, %arg1: i32) -> (i32, i32, i32) {
    %c0_i32 = arith.constant 0 : i32
    %c0_i32_0 = arith.constant 0 : i32
    %c0_i32_1 = arith.constant 0 : i32
    return %arg0, %c0_i32, %c0_i32_0 : i32, i32, i32
  }
}

</mosaic_0001>

<llo_original>
// kernel: tpu_custom_call.1
$region0: #{tpu_custom_call.1}
  #allocation0 [shape = 'u32[]', space=smem, size = 0x4, offset = 0x4, fixed_abs, tag = 'smem constant byte address 0x4 - core index']
  #allocation1 [shape = 'u32[144,128]{1,0:T(1,128)}', space=vmem, size = 0x12000, scoped, tag = 'internal scratch']
  %s0 = inlined_call_operand.hbm [shape: f32[8,256], index: 0, kind: input, shape index: {}]
  %s1 = inlined_call_operand.hbm [shape: f32[8,256], index: 1, kind: input, shape index: {}]
  %s2 = inlined_call_operand.hbm [shape: f32[1,8,256], index: 2, kind: output, shape index: {0}]
  %s3 = inlined_call_operand.hbm [shape: f32[1,8,256], index: 3, kind: output, shape index: {1}]
  %4 = xla_tuple %s2, %s3
  %s5 = sld [smem:[#allocation0]]
  $region38: #{tpu_custom_call.1} parent=0
    _
  %s7 = ssub.s32 1, %s5
  %s8 = scalar_select 0, %s7, %s5
  $region1: #{tpu_custom_call.1} parent=0
    #allocation2 [shape = 'u8[8192]{0}', space=vmem, size = 0x2000, scoped, tag = 'input window, operand 0, single buffered']
    #allocation3 [shape = 's32[1]{0}', space=sflag, size = 0x4, scoped, tag = 'scoped memory for tpu_custom_call.1']
    #allocation4 [shape = 's32[1]{0}', space=sflag, size = 0x4, scoped, tag = 'scoped memory for tpu_custom_call.1']
    #allocation5 [shape = 'u8[8192]{0}', space=vmem, size = 0x2000, scoped, tag = 'input window, operand 1, single buffered']
    #allocation6 [shape = 's32[1]{0}', space=sflag, size = 0x4, scoped, tag = 'scoped memory for tpu_custom_call.1']
    #allocation7 [shape = 'u8[8192]{0}', space=vmem, size = 0x2000, scoped, tag = 'output window, operand 0, single buffered']
    #allocation8 [shape = 'u8[8192]{0}', space=vmem, size = 0x2000, scoped, tag = 'output window, operand 1, single buffered']
    #allocation9 [shape = 's32[1]{0}', space=sflag, size = 0x4, scoped, tag = 'scoped memory for tpu_custom_call.1']
    %9 = vsyncpa [#allocation3], 0
    %10 = vsyncpa [#allocation6], 0
    %11 = vsyncpa [#allocation4], 0
    %12 = vsyncpa [#allocation9], 0
    // Predicated region
    $region2: #{tpu_custom_call.1} parent=1 // pred_check
      _
    $region3: #{tpu_custom_call.1} parent=1 // pred_check_branch
      %14 = sbr.rel (0) target = $region5
    $region4: #{tpu_custom_call.1} parent=1 // pred_region
      %s15 = sadd.s32 0, 0
      %p16 = scmp.lt.s32.totalorder %s15, 0
      %s17 = scalar_select %p16, %s15, 0
      %s19 = ssub.s32 256, 256
      %20 = vsyncadd [#allocation3], %s19
      %s21 = smul.addr %s17, 2
      %s22 = smul.addr %s21, 128
      %s23 = scalar_lea.hbm %s0, %s22
      %s25 = sshll.u32 [#allocation2], 4
      %s26 = int_to_ptr.vmem [resolvable:$true] %s25
      %28 = dma.hbm_to_vmem [thread:$0]  %s23, 256, %s26, [#allocation3]
    $region5: #{tpu_custom_call.1} parent=1 // pred_fallthru
      _
    // Predicated region
    $region6: #{tpu_custom_call.1} parent=1 // pred_check
      _
    $region7: #{tpu_custom_call.1} parent=1 // pred_check_branch
      %30 = sbr.rel (0) target = $region9
    $region8: #{tpu_custom_call.1} parent=1 // pred_region
      %s31 = sadd.s32 0, 0
      %p32 = scmp.lt.s32.totalorder %s31, 0
      %s33 = scalar_select %p32, %s31, 0
      %s35 = ssub.s32 256, 256
      %36 = vsyncadd [#allocation6], %s35
      %s37 = smul.addr %s33, 2
      %s38 = smul.addr %s37, 128
      %s39 = scalar_lea.hbm %s1, %s38
      %s41 = sshll.u32 [#allocation5], 4
      %s42 = int_to_ptr.vmem [resolvable:$true] %s41
      %44 = dma.hbm_to_vmem [thread:$0]  %s39, 256, %s42, [#allocation6]
    $region9: #{tpu_custom_call.1} parent=1 // pred_fallthru
      _
    // Predicated region
    $region10: #{tpu_custom_call.1} parent=1 // pred_check
      _
    $region11: #{tpu_custom_call.1} parent=1 // pred_check_branch
      %46 = sbr.rel (0) target = $region13
    $region12: #{tpu_custom_call.1} parent=1 // pred_region
      %47 = dma.done [#allocation3], 256
    $region13: #{tpu_custom_call.1} parent=1 // pred_fallthru
      _
    // Predicated region
    $region14: #{tpu_custom_call.1} parent=1 // pred_check
      _
    $region15: #{tpu_custom_call.1} parent=1 // pred_check_branch
      %49 = sbr.rel (0) target = $region17
    $region16: #{tpu_custom_call.1} parent=1 // pred_region
      %50 = dma.done [#allocation6], 256
    $region17: #{tpu_custom_call.1} parent=1 // pred_fallthru
      _
    %s51 = sadd.s32 0, 0
    %p52 = scmp.lt.s32.totalorder %s51, 0
    %s53 = scalar_select %p52, %s51, 0
    %s54 = sadd.s32 0, 0
    %p55 = scmp.lt.s32.totalorder %s54, 0
    %s56 = scalar_select %p55, %s54, 0
    %p57 = scmp.eq.s32.totalorder 0, 0
    // Predicated region
    $region18: #{tpu_custom_call.1} parent=1 // pred_check
      %p58 = pneg %p57
    $region19: #{tpu_custom_call.1} parent=1 // pred_check_branch
      %60 = sbr.rel (%p58) target = $region21
    $region20: #{tpu_custom_call.1} parent=1 // pred_region
      %61 = vst [vmem:[#allocation7] sm:$0xff] 0.0
      %62 = vst [vmem:[#allocation7 + $0x8] sm:$0xff] 0.0
      %63 = vst [vmem:[#allocation8] sm:$0xff] 0.0
      %64 = vst [vmem:[#allocation8 + $0x8] sm:$0xff] 0.0
    $region21: #{tpu_custom_call.1} parent=1 // pred_fallthru
      _
    %s65 = smul.u32 0, 2
    %s66 = smul.addr %s65, 8
    %s67 = scalar_lea.vmem [#allocation2], %s66
    %v68 = vld [vmem:[%s67] sm:$0xff]
    %v69 = vld [vmem:[%s67 + $0x8] sm:$0xff]
    %s70 = smul.addr %s65, 8
    %s71 = scalar_lea.vmem [#allocation5], %s70
    %v72 = vld [vmem:[%s71] sm:$0xff]
    %v73 = vld [vmem:[%s71 + $0x8] sm:$0xff]
    %v74 = vsub.f32 %v68, %v72
    %v75 = vsub.f32 %v69, %v73
    %v76 = vld [vmem:[#allocation7] sm:$0xff]
    %v77 = vld [vmem:[#allocation7 + $0x8] sm:$0xff]
    %v78 = vmul.f32 %v74, %v74
    %v79 = vmul.f32 %v75, %v75
    %v80 = vadd.f32 %v78, 0.0
    %v81 = vadd.f32 %v79, 0.0
    %v82 = vadd.f32 %v76, %v80
    %v83 = vadd.f32 %v77, %v81
    %84 = vst [vmem:[#allocation7] sm:$0xff] %v82
    %85 = vst [vmem:[#allocation7 + $0x8] sm:$0xff] %v83
    %v86 = vld [vmem:[#allocation8] sm:$0xff]
    %v87 = vld [vmem:[#allocation8 + $0x8] sm:$0xff]
    %v88 = vand.u32 2147483647, %v74
    %v89 = vand.u32 2147483647, %v75
    %v90 = vadd.f32 %v88, 0.0
    %v91 = vadd.f32 %v89, 0.0
    %v92 = vadd.f32 %v86, %v90
    %v93 = vadd.f32 %v87, %v91
    %94 = vst [vmem:[#allocation8] sm:$0xff] %v92
    %95 = vst [vmem:[#allocation8 + $0x8] sm:$0xff] %v93
    // Predicated region
    $region22: #{tpu_custom_call.1} parent=1 // pred_check
      _
    $region23: #{tpu_custom_call.1} parent=1 // pred_check_branch
      %97 = sbr.rel (0) target = $region25
    $region24: #{tpu_custom_call.1} parent=1 // pred_region
      %s99 = ssub.s32 256, 256
      %100 = vsyncadd [#allocation4], %s99
      %s102 = sshll.u32 [#allocation7], 4
      %s103 = int_to_ptr.vmem [resolvable:$true] %s102
      %105 = dma.vmem_to_hbm [thread:$0]  %s103, 256, %s2, [#allocation4]
    $region25: #{tpu_custom_call.1} parent=1 // pred_fallthru
      _
    // Predicated region
    $region26: #{tpu_custom_call.1} parent=1 // pred_check
      _
    $region27: #{tpu_custom_call.1} parent=1 // pred_check_branch
      %107 = sbr.rel (0) target = $region29
    $region28: #{tpu_custom_call.1} parent=1 // pred_region
      %s109 = ssub.s32 256, 256
      %110 = vsyncadd [#allocation9], %s109
      %s112 = sshll.u32 [#allocation8], 4
      %s113 = int_to_ptr.vmem [resolvable:$true] %s112
      %115 = dma.vmem_to_hbm [thread:$0]  %s113, 256, %s3, [#allocation9]
    $region29: #{tpu_custom_call.1} parent=1 // pred_fallthru
      _
    // Predicated region
    $region30: #{tpu_custom_call.1} parent=1 // pred_check
      _
    $region31: #{tpu_custom_call.1} parent=1 // pred_check_branch
      %117 = sbr.rel (0) target = $region33
    $region32: #{tpu_custom_call.1} parent=1 // pred_region
      %118 = dma.done [#allocation4], 256
    $region33: #{tpu_custom_call.1} parent=1 // pred_fallthru
      _
    // Predicated region
    $region34: #{tpu_custom_call.1} parent=1 // pred_check
      _
    $region35: #{tpu_custom_call.1} parent=1 // pred_check_branch
      %120 = sbr.rel (0) target = $region37
    $region36: #{tpu_custom_call.1} parent=1 // pred_region
      %121 = dma.done [#allocation9], 256
    $region37: #{tpu_custom_call.1} parent=1 // pred_fallthru
      _
    %122 = vsyncpa [#allocation3], 1
    %123 = vsyncpa [#allocation6], 1
    %124 = vsyncpa [#allocation4], 1
    %125 = vsyncpa [#allocation9], 1

</llo_original>
